<compile_context>
chip_gen: v5e
topology: v5e:2x2
jax: 0.10.0
libtpu: 0.0.40
codegen_flags: <defaults>
</compile_context>

<pallas_src>
import functools

import jax
import jax.numpy as jnp
from jax import lax
from jax.experimental import pallas as pl
from jax.experimental.pallas import tpu as pltpu


def _vmem_capacity_bytes():
    """Best-effort VMEM capacity query; conservative fallback (v7x per-TC)."""
    try:
        return int(pltpu.get_tpu_info().vmem_capacity_bytes)
    except Exception:
        return 64 << 20


def _pipeline_footprint_bytes(rows, cols, itemsize):
    # 2x double-buffered input blocks + 2x double-buffered output blocks
    # + headroom for f32 working copies of one tile + fixed Mosaic margin.
    return 4 * rows * cols * itemsize + 3 * rows * cols * 4 + (4 << 20)


# ---------------------------------------------------------------------------
# Fused single-call path: one (block_rows, HW) block per grid step.
# ---------------------------------------------------------------------------
def _adain_rows_kernel(w_ref, x_ref, gb_ref, o_ref, *, eps):
    """w_ref: SMEM f32[2]; x_ref/o_ref: (block_rows, HW); gb_ref: (block_rows, 2)."""
    inv_hw = 1.0 / float(x_ref.shape[-1])

    # Pass 1: mean.
    mean = jnp.sum(x_ref[...].astype(jnp.float32), axis=-1, keepdims=True) * inv_hw
    # Pass 2: centered variance (re-read the VMEM-resident tile rather than
    # keeping a full f32 copy live; avoids E[x^2]-E[x]^2 cancellation).
    xc = x_ref[...].astype(jnp.float32) - mean
    var = jnp.sum(xc * xc, axis=-1, keepdims=True) * inv_hw
    inv_std = lax.rsqrt(var + eps)

    gamma = gb_ref[:, 0:1]
    beta = gb_ref[:, 1:2]
    w0 = w_ref[0]
    w1 = w_ref[1]

    # Fold affine + blend:  o = w0*x + w1*((x-mean)*inv_std*gamma + beta)
    #                         = a*x + b  with per-row a, b.
    g_inv = gamma * inv_std
    a = w0 + w1 * g_inv
    b = w1 * (beta - g_inv * mean)

    o_ref[...] = (a * x_ref[...] + b).astype(o_ref.dtype)


# ---------------------------------------------------------------------------
# HW-chunked fallback (very large H*W): two pallas_calls.
# ---------------------------------------------------------------------------
def _stats_kernel(w_ref, x_ref, gb_ref, ab_ref, s1_ref, s2_ref,
                  *, eps, hw_total, hw_chunk):
    """Accumulate per-row sums over HW chunks; emit per-row (a, b) at the end."""
    h = pl.program_id(1)

    @pl.when(h == 0)
    def _():
        s1_ref[...] = jnp.zeros_like(s1_ref)
        s2_ref[...] = jnp.zeros_like(s2_ref)

    x = x_ref[...].astype(jnp.float32)
    # Lane mask for the (possibly) ragged last HW chunk.
    col = lax.broadcasted_iota(jnp.int32, x.shape, 1) + h * hw_chunk
    xm = jnp.where(col < hw_total, x, 0.0)
    s1_ref[...] += jnp.sum(xm, axis=-1, keepdims=True)
    s2_ref[...] += jnp.sum(xm * xm, axis=-1, keepdims=True)

    @pl.when(h == pl.num_programs(1) - 1)
    def _():
        inv_hw = 1.0 / float(hw_total)
        mean = s1_ref[...] * inv_hw
        # Single-pass variance here (a second HW sweep would cost another full
        # HBM read); clamped at 0 to guard against cancellation.
        var = jnp.maximum(s2_ref[...] * inv_hw - mean * mean, 0.0)
        inv_std = lax.rsqrt(var + eps)
        gamma = gb_ref[:, 0:1]
        beta = gb_ref[:, 1:2]
        g_inv = gamma * inv_std
        w0 = w_ref[0]
        w1 = w_ref[1]
        ab_ref[:, 0:1] = w0 + w1 * g_inv
        ab_ref[:, 1:2] = w1 * (beta - g_inv * mean)


def _apply_kernel(x_ref, ab_ref, o_ref):
    a = ab_ref[:, 0:1]
    b = ab_ref[:, 1:2]
    o_ref[...] = (a * x_ref[...].astype(jnp.float32) + b).astype(o_ref.dtype)


def _adain_chunked(x_rows, gb_rows, w, *, eps, block_rows, hw_chunk,
                   vmem_limit, out_dtype):
    NC, HW = x_rows.shape
    grid_r = pl.cdiv(NC, block_rows)
    grid_h = pl.cdiv(HW, hw_chunk)

    ab = pl.pallas_call(
        functools.partial(_stats_kernel, eps=eps, hw_total=HW, hw_chunk=hw_chunk),
        out_shape=jax.ShapeDtypeStruct((NC, 2), jnp.float32),
        grid=(grid_r, grid_h),
        in_specs=[
            pl.BlockSpec(memory_space=pltpu.SMEM),                     # (w0, w1)
            pl.BlockSpec((block_rows, hw_chunk), lambda r, h: (r, h)),  # x chunk
            pl.BlockSpec((block_rows, 2), lambda r, h: (r, 0)),         # gamma/beta
        ],
        out_specs=pl.BlockSpec((block_rows, 2), lambda r, h: (r, 0)),   # (a, b)
        scratch_shapes=[pltpu.VMEM((block_rows, 1), jnp.float32),
                        pltpu.VMEM((block_rows, 1), jnp.float32)],
        compiler_params=pltpu.CompilerParams(
            dimension_semantics=("parallel", "arbitrary"),
            vmem_limit_bytes=vmem_limit),
    )(w, x_rows, gb_rows)

    out_rows = pl.pallas_call(
        _apply_kernel,
        out_shape=jax.ShapeDtypeStruct((NC, HW), out_dtype),
        grid=(grid_r, grid_h),
        in_specs=[
            pl.BlockSpec((block_rows, hw_chunk), lambda r, h: (r, h)),
            pl.BlockSpec((block_rows, 2), lambda r, h: (r, 0)),
        ],
        out_specs=pl.BlockSpec((block_rows, hw_chunk), lambda r, h: (r, h)),
        compiler_params=pltpu.CompilerParams(
            dimension_semantics=("parallel", "parallel"),
            vmem_limit_bytes=vmem_limit),
    )(x_rows, ab)
    return out_rows


# ---------------------------------------------------------------------------
# Public wrapper
# ---------------------------------------------------------------------------
def adaptive_instance_norm(x, w0, w1, gamma, beta, *, eps=1e-3,
                           target_block_bytes=None, hw_chunk=None):
    """x: (N, C, H, W). gamma/beta: (C,) InstanceNorm2d affine parameters.

    Returns w0 * x + w1 * instance_norm(x, gamma, beta, eps), same shape/dtype.
    `hw_chunk` (multiple of 128) forces the HW-tiled two-call path (testing /
    very large feature maps)."""
    N, C, H, W = x.shape
    NC, HW = N * C, H * W
    itemsize = jnp.dtype(x.dtype).itemsize
    # dtype-dependent sublane tile: f32 -> 8, bf16 -> 16, int8/fp8 -> 32.
    row_align = max(8, 32 // max(itemsize, 1))

    # Per-generation sizing: big blocks on 128-MiB VMEM parts, capped on v7x.
    vmem_cap = _vmem_capacity_bytes()
    big_vmem = vmem_cap >= (100 << 20)                   # v5e / v6e
    vmem_limit_cap = (96 << 20) if big_vmem else (48 << 20)
    if target_block_bytes is None:
        target_block_bytes = (8 << 20) if big_vmem else (4 << 20)

    x_rows = x.reshape(NC, HW)
    gamma_rows = jnp.tile(jnp.asarray(gamma, jnp.float32).reshape(C), (N,))
    beta_rows = jnp.tile(jnp.asarray(beta, jnp.float32).reshape(C), (N,))
    gb_rows = jnp.stack([gamma_rows, beta_rows], axis=-1)          # (NC, 2) f32
    w = jnp.stack([jnp.asarray(w0, jnp.float32).reshape(()),
                   jnp.asarray(w1, jnp.float32).reshape(())])      # (2,) f32

    bytes_per_row = HW * itemsize
    min_rows = NC if NC <= row_align else row_align
    full_hw_ok = (hw_chunk is None and
                  _pipeline_footprint_bytes(min_rows, HW, itemsize) <= vmem_limit_cap)

    if full_hw_ok:
        # ------------- fused single-call path -------------
        if NC <= row_align:
            block_rows = NC                                    # full-dim block
        else:
            target_rows = max(row_align,
                              (target_block_bytes // max(bytes_per_row, 1))
                              // row_align * row_align)
            # Keep >= ~8 grid steps when the problem is large enough
            # (pipelining + megacore sharding on v7x).
            rows_for_min_grid = (NC // 8) // row_align * row_align
            if rows_for_min_grid >= row_align:
                target_rows = min(target_rows, rows_for_min_grid)
            # Respect the VMEM budget (in/out double buffers + f32 working copies).
            rows_by_vmem = (vmem_limit_cap - (4 << 20)) // max(HW * (4 * itemsize + 12), 1)
            rows_by_vmem = max(row_align, (rows_by_vmem // row_align) * row_align)
            block_rows = min(target_rows, rows_by_vmem, (NC // row_align) * row_align)
            block_rows = max(block_rows, row_align)

        grid_r = pl.cdiv(NC, block_rows)
        vmem_limit = int(min(vmem_limit_cap,
                             max(32 << 20,
                                 _pipeline_footprint_bytes(block_rows, HW, itemsize))))

        out_rows = pl.pallas_call(
            functools.partial(_adain_rows_kernel, eps=eps),
            out_shape=jax.ShapeDtypeStruct((NC, HW), x.dtype),
            grid=(grid_r,),
            in_specs=[
                pl.BlockSpec(memory_space=pltpu.SMEM),              # (w0, w1)
                pl.BlockSpec((block_rows, HW), lambda i: (i, 0)),   # x rows
                pl.BlockSpec((block_rows, 2), lambda i: (i, 0)),    # gamma/beta
            ],
            out_specs=pl.BlockSpec((block_rows, HW), lambda i: (i, 0)),
            compiler_params=pltpu.CompilerParams(
                dimension_semantics=("parallel",),
                vmem_limit_bytes=vmem_limit),
        )(w, x_rows, gb_rows)
    else:
        # ------------- HW-tiled two-call path (large H*W or forced) -------------
        block_rows = NC if NC <= row_align else row_align
        if hw_chunk is None:
            cols = max(128, (target_block_bytes // max(block_rows * itemsize, 1))
                       // 128 * 128)
            max_cols = (vmem_limit_cap - (4 << 20)) // max(block_rows * (4 * itemsize + 12), 1)
            cols = min(cols, max(128, (max_cols // 128) * 128))
            hw_chunk = HW if cols >= HW else cols
        hw_chunk = int(hw_chunk)
        vmem_limit = int(min(vmem_limit_cap,
                             max(32 << 20,
                                 _pipeline_footprint_bytes(block_rows, hw_chunk, itemsize))))
        out_rows = _adain_chunked(x_rows, gb_rows, w, eps=eps,
                                  block_rows=block_rows, hw_chunk=hw_chunk,
                                  vmem_limit=vmem_limit, out_dtype=x.dtype)

    return out_rows.reshape(N, C, H, W)


def _reference(x, w0, w1, gamma, beta, eps=1e-3):
    """Pure-JAX reference mirroring the PyTorch forward."""
    xf = x.astype(jnp.float32)
    mean = jnp.mean(xf, axis=(2, 3), keepdims=True)
    var = jnp.mean((xf - mean) ** 2, axis=(2, 3), keepdims=True)
    normed = (xf - mean) / jnp.sqrt(var + eps)
    normed = normed * jnp.asarray(gamma, jnp.float32).reshape(1, -1, 1, 1) \
        + jnp.asarray(beta, jnp.float32).reshape(1, -1, 1, 1)
    w0f = jnp.asarray(w0, jnp.float32).reshape(())
    w1f = jnp.asarray(w1, jnp.float32).reshape(())
    return (w0f * xf + w1f * normed).astype(x.dtype)


if __name__ == "__main__":
    key = jax.random.PRNGKey(0)
    N, C, H, W = 2, 4, 16, 16
    x = jax.random.normal(key, (N, C, H, W), dtype=jnp.float32)

    # Exact module init: w_0 = 1.0, w_1 = 0.0; InstanceNorm2d affine: weight=1, bias=0.
    w0 = jnp.ones((1,), jnp.float32)
    w1 = jnp.zeros((1,), jnp.float32)
    gamma = jnp.ones((C,), jnp.float32)
    beta = jnp.zeros((C,), jnp.float32)

    out = jax.block_until_ready(adaptive_instance_norm(x, w0, w1, gamma, beta))
    ref = _reference(x, w0, w1, gamma, beta)
    assert out.shape == x.shape and out.dtype == x.dtype
    assert jnp.allclose(out, ref, atol=1e-5, rtol=1e-5)

    # Non-trivial blend + affine, plus a DC offset (exercises two-pass variance).
    k2 = jax.random.PRNGKey(1)
    gamma2 = jax.random.normal(k2, (C,), jnp.float32) * 0.5 + 1.0
    beta2 = jax.random.normal(jax.random.fold_in(k2, 1), (C,), jnp.float32)
    w0b, w1b = jnp.float32(0.7), jnp.float32(0.3)
    x2 = x + 10.0
    out2 = jax.block_until_ready(adaptive_instance_norm(x2, w0b, w1b, gamma2, beta2))
    assert jnp.allclose(out2, _reference(x2, w0b, w1b, gamma2, beta2),
                        atol=1e-4, rtol=1e-4)

    # Ragged rows, NC < 8 (full-dim row block, no padding).
    x3 = jax.random.normal(jax.random.PRNGKey(2), (1, 3, 8, 16), jnp.float32)
    g3 = jnp.ones((3,), jnp.float32)
    b3 = jnp.zeros((3,), jnp.float32)
    out3 = jax.block_until_ready(adaptive_instance_norm(x3, w0b, w1b, g3, b3))
    assert jnp.allclose(out3, _reference(x3, w0b, w1b, g3, b3), atol=1e-4, rtol=1e-4)

    # Ragged rows, NC > 8 (partial last row block via cdiv, no padding).
    x4 = jax.random.normal(jax.random.PRNGKey(3), (2, 5, 8, 16), jnp.float32)
    g4 = jax.random.normal(jax.random.PRNGKey(4), (5,), jnp.float32) * 0.3 + 1.0
    b4 = jax.random.normal(jax.random.PRNGKey(5), (5,), jnp.float32) * 0.2
    out4 = jax.block_until_ready(adaptive_instance_norm(x4, w0b, w1b, g4, b4))
    assert jnp.allclose(out4, _reference(x4, w0b, w1b, g4, b4), atol=1e-4, rtol=1e-4)

    # HW-chunked two-call path, forced at a small shape, with a ragged last
    # HW chunk (HW=320, chunk=256) to exercise the lane mask.
    x5 = jax.random.normal(jax.random.PRNGKey(6), (1, 4, 16, 20), jnp.float32) + 3.0
    g5 = jax.random.normal(jax.random.PRNGKey(7), (4,), jnp.float32) * 0.3 + 1.0
    b5 = jax.random.normal(jax.random.PRNGKey(8), (4,), jnp.float32) * 0.2
    out5 = jax.block_until_ready(
        adaptive_instance_norm(x5, w0b, w1b, g5, b5, hw_chunk=256))
    assert jnp.allclose(out5, _reference(x5, w0b, w1b, g5, b5), atol=1e-4, rtol=1e-4)

    # bf16 input (stats computed in f32 inside the kernel).
    x6 = jax.random.normal(jax.random.PRNGKey(9), (2, 4, 16, 16),
                           jnp.float32).astype(jnp.bfloat16)
    out6 = jax.block_until_ready(adaptive_instance_norm(x6, w0b, w1b, gamma2, beta2))
    ref6 = _reference(x6, w0b, w1b, gamma2, beta2)
    assert out6.dtype == jnp.bfloat16
    assert jnp.allclose(out6.astype(jnp.float32), ref6.astype(jnp.float32),
                        atol=3e-2, rtol=3e-2)

    print("KERNEL_OK")
</pallas_src>

<mosaic_0001>
module attributes {stable_mosaic.version = 11 : i64} {
  func.func @_adain_rows_kernel(%arg0: i32, %arg1: memref<2xf32, #tpu.memory_space<smem>>, %arg2: memref<8x256xf32, #tpu.memory_space<vmem>>, %arg3: memref<8x2xf32, #tpu.memory_space<vmem>>, %arg4: memref<8x256xf32, #tpu.memory_space<vmem>>) attributes {dimension_semantics = [#tpu.dimension_semantics<parallel>], iteration_bounds = array<i64: 1>, scalar_prefetch = 0 : i64, scratch_operands = 0 : i64, tpu.core_type = #tpu.core_type<tc>, window_params = [{transform_indices = @transform_0, window_bounds = array<i64: 2>}, {transform_indices = @transform_1, window_bounds = array<i64: 8, 256>}, {transform_indices = @transform_2, window_bounds = array<i64: 8, 2>}, {transform_indices = @transform_3, window_bounds = array<i64: 8, 256>}]} {
    %c0 = arith.constant 0 : index
    %c0_0 = arith.constant 0 : index
    %0 = vector.load %arg2[%c0, %c0_0] : memref<8x256xf32, #tpu.memory_space<vmem>>, vector<8x256xf32>
    %cst = arith.constant dense<0.000000e+00> : vector<8xf32>
    %1 = vector.multi_reduction <add>, %0, %cst [1] : vector<8x256xf32> to vector<8xf32>
    %2 = vector.shape_cast %1 : vector<8xf32> to vector<8x1xf32>
    %cst_1 = arith.constant 3.906250e-03 : f32
    %3 = vector.broadcast %cst_1 : f32 to vector<8x1xf32>
    %4 = arith.mulf %2, %3 : vector<8x1xf32>
    %c0_2 = arith.constant 0 : index
    %c0_3 = arith.constant 0 : index
    %5 = vector.load %arg2[%c0_2, %c0_3] : memref<8x256xf32, #tpu.memory_space<vmem>>, vector<8x256xf32>
    %6 = vector.broadcast %4 : vector<8x1xf32> to vector<8x256xf32>
    %7 = arith.subf %5, %6 : vector<8x256xf32>
    %8 = arith.mulf %7, %7 : vector<8x256xf32>
    %cst_4 = arith.constant dense<0.000000e+00> : vector<8xf32>
    %9 = vector.multi_reduction <add>, %8, %cst_4 [1] : vector<8x256xf32> to vector<8xf32>
    %10 = vector.shape_cast %9 : vector<8xf32> to vector<8x1xf32>
    %cst_5 = arith.constant 3.906250e-03 : f32
    %11 = vector.broadcast %cst_5 : f32 to vector<8x1xf32>
    %12 = arith.mulf %10, %11 : vector<8x1xf32>
    %cst_6 = arith.constant 1.000000e-03 : f32
    %13 = vector.broadcast %cst_6 : f32 to vector<8x1xf32>
    %14 = arith.addf %12, %13 : vector<8x1xf32>
    %15 = math.rsqrt %14 : vector<8x1xf32>
    %c0_7 = arith.constant 0 : index
    %c0_8 = arith.constant 0 : index
    %16 = vector.load %arg3[%c0_7, %c0_8] : memref<8x2xf32, #tpu.memory_space<vmem>>, vector<8x1xf32>
    %c0_9 = arith.constant 0 : index
    %c1 = arith.constant 1 : index
    %17 = vector.load %arg3[%c0_9, %c1] : memref<8x2xf32, #tpu.memory_space<vmem>>, vector<8x1xf32>
    %c0_10 = arith.constant 0 : index
    %18 = memref.load %arg1[%c0_10] : memref<2xf32, #tpu.memory_space<smem>>
    %c1_11 = arith.constant 1 : index
    %19 = memref.load %arg1[%c1_11] : memref<2xf32, #tpu.memory_space<smem>>
    %20 = arith.mulf %16, %15 : vector<8x1xf32>
    %21 = vector.broadcast %19 : f32 to vector<8x1xf32>
    %22 = arith.mulf %21, %20 : vector<8x1xf32>
    %23 = vector.broadcast %18 : f32 to vector<8x1xf32>
    %24 = arith.addf %23, %22 : vector<8x1xf32>
    %25 = arith.mulf %20, %4 : vector<8x1xf32>
    %26 = arith.subf %17, %25 : vector<8x1xf32>
    %27 = vector.broadcast %19 : f32 to vector<8x1xf32>
    %28 = arith.mulf %27, %26 : vector<8x1xf32>
    %c0_12 = arith.constant 0 : index
    %c0_13 = arith.constant 0 : index
    %29 = vector.load %arg2[%c0_12, %c0_13] : memref<8x256xf32, #tpu.memory_space<vmem>>, vector<8x256xf32>
    %30 = vector.broadcast %24 : vector<8x1xf32> to vector<8x256xf32>
    %31 = arith.mulf %30, %29 : vector<8x256xf32>
    %32 = vector.broadcast %28 : vector<8x1xf32> to vector<8x256xf32>
    %33 = arith.addf %31, %32 : vector<8x256xf32>
    %c0_14 = arith.constant 0 : index
    %c0_15 = arith.constant 0 : index
    %34 = vector.load %arg4[%c0_14, %c0_15] : memref<8x256xf32, #tpu.memory_space<vmem>>, vector<8x256xf32>
    tpu.vector_store %arg4[%c0_14, %c0_15], %33 {strides = array<i32>} : memref<8x256xf32, #tpu.memory_space<vmem>>, vector<8x256xf32>,
    return
  }
  func.func @transform_0(%arg0: i32) -> i32 {
    %c0_i32 = arith.constant 0 : i32
    %c0_i32_0 = arith.constant 0 : i32
    return %c0_i32 : i32
  }
  func.func @transform_1(%arg0: i32) -> (i32, i32) {
    %c0_i32 = arith.constant 0 : i32
    %c0_i32_0 = arith.constant 0 : i32
    return %arg0, %c0_i32 : i32, i32
  }
  func.func @transform_2(%arg0: i32) -> (i32, i32) {
    %c0_i32 = arith.constant 0 : i32
    %c0_i32_0 = arith.constant 0 : i32
    return %arg0, %c0_i32 : i32, i32
  }
  func.func @transform_3(%arg0: i32) -> (i32, i32) {
    %c0_i32 = arith.constant 0 : i32
    %c0_i32_0 = arith.constant 0 : i32
    return %arg0, %c0_i32 : i32, i32
  }
}

</mosaic_0001>

<llo_original>
// kernel: tpu_custom_call.1
$region0: #{tpu_custom_call.1}
  #allocation0 [shape = 'u32[]', space=smem, size = 0x4, offset = 0x4, fixed_abs, tag = 'smem constant byte address 0x4 - core index']
  #allocation1 [shape = 'u32[72,128]{1,0:T(1,128)}', space=vmem, size = 0x9000, scoped, tag = 'internal scratch']
  %s0 = inlined_call_operand.vmem [shape: f32[2], index: 0, kind: input, shape index: {}]
  %s1 = inlined_call_operand.hbm [shape: f32[8,256], index: 1, kind: input, shape index: {}]
  %s2 = inlined_call_operand.vmem [shape: f32[8,2], index: 2, kind: input, shape index: {}]
  %s3 = inlined_call_operand.hbm [shape: f32[8,256], index: 3, kind: output, shape index: {}]
  %s4 = sld [smem:[#allocation0]]
  $region30: #{tpu_custom_call.1} parent=0
    _
  %s6 = ssub.s32 1, %s4
  %s7 = scalar_select 0, %s6, %s4
  $region1: #{tpu_custom_call.1} parent=0
    #allocation2 [shape = 'u8[512]{0}', space=smem, size = 0x200, scoped, tag = 'input window, operand 0, single buffered']
    #allocation3 [shape = 's32[1]{0}', space=sflag, size = 0x4, scoped, tag = 'scoped memory for tpu_custom_call.1']
    #allocation4 [shape = 's32[1]{0}', space=sflag, size = 0x4, scoped, tag = 'scoped memory for tpu_custom_call.1']
    #allocation5 [shape = 's32[1]{0}', space=sflag, size = 0x4, scoped, tag = 'scoped memory for tpu_custom_call.1']
    #allocation6 [shape = 'u8[8192]{0}', space=vmem, size = 0x2000, scoped, tag = 'input window, operand 1, single buffered']
    #allocation7 [shape = 'u8[8192]{0}', space=vmem, size = 0x2000, scoped, tag = 'output window, operand 0, single buffered']
    %8 = vsyncpa [#allocation5], 0
    %9 = vsyncpa [#allocation3], 0
    %10 = vsyncpa [#allocation4], 0
    // Predicated region
    $region2: #{tpu_custom_call.1} parent=1 // pred_check
      _
    $region3: #{tpu_custom_call.1} parent=1 // pred_check_branch
      %12 = sbr.rel (0) target = $region5
    $region4: #{tpu_custom_call.1} parent=1 // pred_region
      %14 = vsyncadd [#allocation5], 0
      %s16 = sshll.u32 %s0, 4
      %s17 = int_to_ptr.vmem [resolvable:$true] %s16
      %19 = dma.vmem_to_smem %s17, 16, [#allocation2], [#allocation5]
    $region5: #{tpu_custom_call.1} parent=1 // pred_fallthru
      _
    // Predicated region
    $region6: #{tpu_custom_call.1} parent=1 // pred_check
      _
    $region7: #{tpu_custom_call.1} parent=1 // pred_check_branch
      %21 = sbr.rel (0) target = $region9
    $region8: #{tpu_custom_call.1} parent=1 // pred_region
      %23 = vsyncadd [#allocation3], 0
      %s25 = sshll.u32 %s1, 4
      %s26 = int_to_ptr.hbm [resolvable:$true] %s25
      %s27 = sshll.u32 [#allocation6], 4
      %s28 = int_to_ptr.vmem [resolvable:$true] %s27
      %30 = dma.hbm_to_vmem [thread:$0]  %s26, 256, %s28, [#allocation3]
    $region9: #{tpu_custom_call.1} parent=1 // pred_fallthru
      _
    // Predicated region
    $region10: #{tpu_custom_call.1} parent=1 // pred_check
      _
    $region11: #{tpu_custom_call.1} parent=1 // pred_check_branch
      %32 = sbr.rel (0) target = $region13
    $region12: #{tpu_custom_call.1} parent=1 // pred_region
      _
    $region13: #{tpu_custom_call.1} parent=1 // pred_fallthru
      _
    // Predicated region
    $region14: #{tpu_custom_call.1} parent=1 // pred_check
      _
    $region15: #{tpu_custom_call.1} parent=1 // pred_check_branch
      %34 = sbr.rel (0) target = $region17
    $region16: #{tpu_custom_call.1} parent=1 // pred_region
      %36 = dma.done [#allocation5], 16
    $region17: #{tpu_custom_call.1} parent=1 // pred_fallthru
      _
    // Predicated region
    $region18: #{tpu_custom_call.1} parent=1 // pred_check
      _
    $region19: #{tpu_custom_call.1} parent=1 // pred_check_branch
      %38 = sbr.rel (0) target = $region21
    $region20: #{tpu_custom_call.1} parent=1 // pred_region
      %40 = dma.done [#allocation3], 256
    $region21: #{tpu_custom_call.1} parent=1 // pred_fallthru
      _
    %41 = sfence
    %v42 = vld [vmem:[#allocation6] sm:$0xff]
    %v43 = vld [vmem:[#allocation6 + $0x8] sm:$0xff]
    %v44 = vadd.f32 %v42, %v43
    %45 = vadd.xlane.f32.xlu0 %v44
    %v46 = vpop.xlane.xlu0 %45
    %v47 = vmul.f32 %v46, 0.00390625
    %v48 = vsub.f32 %v42, %v47
    %v49 = vsub.f32 %v43, %v47
    %v50 = vmul.f32 %v48, %v48
    %v51 = vmul.f32 %v49, %v49
    %v52 = vadd.f32 %v50, %v51
    %53 = vadd.xlane.f32.xlu0 %v52
    %v54 = vpop.xlane.xlu0 %53
    %v55 = vmul.f32 %v54, 0.00390625
    %v56 = vadd.f32 %v55, 0.001
    %v57 = vrsqrt.pop %v56
    %v58 = vmul.f32 %v57, %v56
    %v59 = vmul.f32 %v58, %v57
    %v60 = vmul.f32 0.5, %v59
    %v61 = vsub.f32 1.5, %v60
    %v62 = vmul.f32 %v57, %v61
    %vm63 = vweird.f32 %v56
    %vm64 = vweird.f32 %v57
    %vm65 = vmor %vm63, %vm64
    %v66 = vsel %vm65, %v57, %v62
    %v67 = vld [vmem:[%s2] sm:$0xff]
    %s68 = sld [smem:[#allocation2]]
    %s69 = sld [smem:[#allocation2 + $0x1]]
    %v70 = vmul.f32 %v67, %v66
    %v71 = vstv %s69
    %v72 = vmul.f32 %v71, %v70
    %v73 = vstv %s68
    %v74 = vadd.f32 %v73, %v72
    %v75 = vmul.f32 %v70, %v47
    %77 = vrot.lane.b32.xlu0 %v75, 1
    %v78 = vpop.permute.xlu0 %77
    %v80 = vsub.f32 %v67, %v78
    %v81 = vmul.f32 %v71, %v80
    %83 = vset.pattern.permute.xlu0 0
    %84 = vperm.xlu0 %83, %v74
    %v85 = vpop.permute.xlu0 %84
    %v87 = vmul.f32 %v85, %v42
    %v88 = vmul.f32 %v85, %v43
    %90 = vset.pattern.permute.xlu0 1
    %91 = vperm.xlu0 %90, %v81
    %v92 = vpop.permute.xlu0 %91
    %v94 = vadd.f32 %v87, %v92
    %v95 = vadd.f32 %v88, %v92
    %96 = vst [vmem:[#allocation7] sm:$0xff] %v94
    %97 = vst [vmem:[#allocation7 + $0x8] sm:$0xff] %v95
    // Predicated region
    $region22: #{tpu_custom_call.1} parent=1 // pred_check
      _
    $region23: #{tpu_custom_call.1} parent=1 // pred_check_branch
      %99 = sbr.rel (0) target = $region25
    $region24: #{tpu_custom_call.1} parent=1 // pred_region
      %101 = vsyncadd [#allocation4], 0
      %s103 = sshll.u32 [#allocation7], 4
      %s104 = int_to_ptr.vmem [resolvable:$true] %s103
      %s105 = sshll.u32 %s3, 4
      %s106 = int_to_ptr.hbm [resolvable:$true] %s105
      %108 = dma.vmem_to_hbm [thread:$0]  %s104, 256, %s106, [#allocation4]
    $region25: #{tpu_custom_call.1} parent=1 // pred_fallthru
      _
    // Predicated region
    $region26: #{tpu_custom_call.1} parent=1 // pred_check
      _
    $region27: #{tpu_custom_call.1} parent=1 // pred_check_branch
      %110 = sbr.rel (0) target = $region29
    $region28: #{tpu_custom_call.1} parent=1 // pred_region
      %112 = dma.done [#allocation4], 256
    $region29: #{tpu_custom_call.1} parent=1 // pred_fallthru
      _
    %113 = vsyncpa [#allocation3], 1
    %114 = vsyncpa [#allocation4], 1
    %115 = vsyncpa [#allocation5], 1

</llo_original>
